<compile_context>
chip_gen: v7x
topology: tpu7x:2x2x1
jax: 0.10.0
libtpu: 0.0.40
codegen_flags: <defaults>
</compile_context>

<pallas_src>
import functools

import jax
import jax.numpy as jnp
from jax.experimental import pallas as pl
from jax.experimental.pallas import tpu as pltpu

_EPS = 1e-12
_MASK = -1e30            # finite "-inf": exp underflows to 0, no inf-inf NaNs
_LANE = 128
_SUBLANE = 8
# tm = tn = 1024 keeps the f32 [tn, tm] similarity + exp temporaries ~8 MiB and
# the whole double-buffered working set well under the 48 MiB scoped-VMEM
# default, so the same defaults are safe on v5e/v6e (128 MiB) and v7x (64 MiB).
_ROW_TILE_CAP = 1024     # query columns per grid step (tm)
_COL_TILE_CAP = 1024     # key rows per grid step (tn)


def _round_up(x, m):
    return ((x + m - 1) // m) * m


def _l2_normalize(x):
    """Matches F.normalize(p=2, dim=-1): x / max(||x||, eps), via rsqrt."""
    x = x.astype(jnp.float32)
    ss = jnp.sum(x * x, axis=-1, keepdims=True)
    return x * jax.lax.rsqrt(jnp.maximum(ss, _EPS * _EPS))


def _choose_row_tile(batch, requested, cap=_ROW_TILE_CAP):
    """Pick tm (query columns per tile) and the padded batch size.

    tm must be a multiple of 128 (lane-aligned qT / output blocks) unless a
    single tile spans the whole padded batch.  The default aims for >= 2 row
    tiles (v7x megacore) of up to `cap` rows each.
    """
    if requested is not None:
        tm = int(requested)
        if tm % _LANE != 0:
            tm = _round_up(max(tm, batch), _SUBLANE)   # single row tile
            return tm, tm
        return tm, _round_up(batch, tm)
    if batch >= 2 * _LANE:
        tm = min(cap, _round_up(pl.cdiv(batch, 2), _LANE))
        return tm, _round_up(batch, tm)
    tm = _round_up(batch, _SUBLANE)                    # single row tile
    return tm, tm


def _choose_col_tile(num_keys, requested, cap=_COL_TILE_CAP):
    tn = int(requested) if requested is not None else min(
        cap, _round_up(num_keys, _SUBLANE))
    tn = _round_up(tn, _SUBLANE)
    return tn, _round_up(num_keys, tn)


def _infonce_lse_kernel(q_ref, keys_ref, out_ref, m_sc, l_sc, *,
                        num_keys, keys_padded, hard_neg_offset,
                        hard_negative_weight, apply_bump, exp_dtype):
    """Streamed online-logsumexp over key tiles for one query-column tile.

    q_ref:    [E, tm]  normalized queries, pre-scaled by 1/T (MXU dtype)
    keys_ref: [tn, E]  normalized key rows [z2; z3] (MXU dtype)
    out_ref:  [1, tm]  per-query logsumexp over all K logits (f32, lane-dense)
    m_sc/l_sc:[1, tm]  running max / running sum-of-exp
    """
    i = pl.program_id(0)
    j = pl.program_id(1)
    nj = pl.num_programs(1)
    tn = keys_ref.shape[0]
    tm = q_ref.shape[1]

    @pl.when(j == 0)
    def _init():
        m_sc[...] = jnp.full_like(m_sc, _MASK)
        l_sc[...] = jnp.zeros_like(l_sc)

    # Canonical MXU matmul: [tn, E] @ [E, tm] -> [tn, tm], f32 accumulation.
    s = jnp.dot(keys_ref[...], q_ref[...], preferred_element_type=jnp.float32)

    if apply_bump or keys_padded:
        key_idx = j * tn + jax.lax.broadcasted_iota(jnp.int32, (tn, 1), 0)
    if apply_bump:
        # Hard-negative diagonal bump applied directly to the streamed logits
        # (same precision as the matmul -> no finalize-time cancellation).
        q_idx = i * tm + jax.lax.broadcasted_iota(jnp.int32, (1, tm), 1)
        s = s + jnp.where(key_idx == q_idx + hard_neg_offset,
                          hard_negative_weight, 0.0)
    if keys_padded:
        s = jnp.where(key_idx < num_keys, s, _MASK)

    # Online logsumexp update; each query is one lane, keys run over sublanes.
    m_prev = m_sc[...]
    m_new = jnp.maximum(m_prev, jnp.max(s, axis=0, keepdims=True))
    p = jnp.exp((s - m_new).astype(exp_dtype)).astype(jnp.float32)
    l_sc[...] = (jnp.exp(m_prev - m_new) * l_sc[...]
                 + jnp.sum(p, axis=0, keepdims=True))
    m_sc[...] = m_new

    @pl.when(j == nj - 1)
    def _finalize():
        out_ref[...] = m_sc[...] + jnp.log(l_sc[...])


def infonce_loss(z1, z2, z3=None, temperature=0.05, hard_negative_weight=0.0, *,
                 block_rows=None, block_cols=None, matmul_dtype=jnp.bfloat16,
                 exp_dtype=jnp.float32, vmem_limit_bytes=None):
    """InfoNCE loss matching contrastive_trainer.InfoNCE.forward (single device).

    z1 (queries), z2 (positives), z3 (optional hard negatives): [B, E].
    Returns a scalar float32 loss.
    """
    B, E = z1.shape
    inv_t = 1.0 / float(temperature)

    # One-shot XLA prologue: normalize, fold 1/T into the queries, cast to the
    # MXU dtype, compute the exact f32 positive-pair logit (diag of sim12).
    z1n = _l2_normalize(z1)
    z2n = _l2_normalize(z2)
    parts = [z2n]
    if z3 is not None:
        parts.append(_l2_normalize(z3))
    keys = jnp.concatenate(parts, axis=0)                 # [K, E], normalized f32
    K = keys.shape[0]
    target = jnp.sum(z1n * z2n, axis=-1) * inv_t          # [B] exact f32

    tm, b_pad = _choose_row_tile(B, block_rows)
    tn, k_pad = _choose_col_tile(K, block_cols)

    q_t = (z1n * inv_t).T.astype(matmul_dtype)             # [E, B]
    if b_pad != B:
        q_t = jnp.pad(q_t, ((0, 0), (0, b_pad - B)))
    keys_m = keys.astype(matmul_dtype)                      # [K, E]
    if k_pad != K:
        keys_m = jnp.pad(keys_m, ((0, k_pad - K), (0, 0)))

    apply_bump = (z3 is not None) and (hard_negative_weight > 0.0)

    kernel = functools.partial(
        _infonce_lse_kernel,
        num_keys=K, keys_padded=(k_pad != K),
        hard_neg_offset=B, hard_negative_weight=float(hard_negative_weight),
        apply_bump=apply_bump, exp_dtype=exp_dtype)

    if vmem_limit_bytes is None:
        # Explicit scoped-VMEM budget: covers the 1024x1024 default tiles plus
        # f32 temporaries on every generation, stays below v7x's 64 MiB
        # physical VMEM and above v5e's 16 MiB default scoped limit.
        vmem_limit_bytes = 48 * 1024 * 1024

    lse = pl.pallas_call(
        kernel,
        out_shape=jax.ShapeDtypeStruct((1, b_pad), jnp.float32),
        grid_spec=pltpu.PrefetchScalarGridSpec(
            num_scalar_prefetch=0,
            grid=(b_pad // tm, k_pad // tn),
            in_specs=[
                # Query tile: resident across the streamed key axis.
                pl.BlockSpec((E, tm), lambda i, j: (0, i)),
                # Key tile: streamed / double-buffered.  On v5e, add
                # pipeline_mode=pl.Buffered(3) if xprof shows exposed key DMA.
                pl.BlockSpec((tn, E), lambda i, j: (j, 0)),
            ],
            out_specs=pl.BlockSpec((1, tm), lambda i, j: (0, i)),
            scratch_shapes=[
                pltpu.VMEM((1, tm), jnp.float32),   # running max
                pltpu.VMEM((1, tm), jnp.float32),   # running sum-of-exp
            ]),
        compiler_params=pltpu.CompilerParams(
            dimension_semantics=("parallel", "arbitrary"),
            vmem_limit_bytes=vmem_limit_bytes),
    )(q_t, keys_m)

    # Tiny [B] finalize outside the kernel.
    return jnp.mean(lse[0, :B] - target)


def _reference_infonce(z1, z2, z3=None, temperature=0.05, hard_negative_weight=0.0):
    """Pure-JAX f32 reference of the PyTorch forward (single device)."""
    def norm(x):
        n = jnp.sqrt(jnp.sum(x * x, axis=-1, keepdims=True))
        return x / jnp.maximum(n, _EPS)

    B = z1.shape[0]
    z1n, z2n = norm(z1), norm(z2)
    logits = (z1n @ z2n.T) / temperature
    if z3 is not None:
        z3n = norm(z3)
        l13 = (z1n @ z3n.T) / temperature
        if hard_negative_weight > 0.0:
            l13 = l13 + hard_negative_weight * jnp.eye(B)
        logits = jnp.concatenate([logits, l13], axis=1)
    lse = jax.scipy.special.logsumexp(logits, axis=-1)
    target = logits[jnp.arange(B), jnp.arange(B)]
    return jnp.mean(lse - target)


if __name__ == "__main__":
    E = 128
    key = jax.random.PRNGKey(0)
    k1, k2, k3, k4, k5, k6 = jax.random.split(key, 6)

    B = 8
    z1 = jax.random.normal(k1, (B, E), dtype=jnp.float32)
    z2 = jax.random.normal(k2, (B, E), dtype=jnp.float32)
    z3 = jax.random.normal(k3, (B, E), dtype=jnp.float32)

    # 1) Hard negatives + nonzero weight; default bf16 MXU path.
    loss = jax.block_until_ready(
        infonce_loss(z1, z2, z3, temperature=0.05, hard_negative_weight=0.1))
    ref = _reference_infonce(z1, z2, z3, temperature=0.05, hard_negative_weight=0.1)
    assert jnp.allclose(loss, ref, rtol=3e-2, atol=3e-2), (loss, ref)

    # 2) Same configuration with f32 MXU operands -> tight match to reference.
    loss_f32 = jax.block_until_ready(
        infonce_loss(z1, z2, z3, temperature=0.05, hard_negative_weight=0.1,
                     matmul_dtype=jnp.float32))
    assert jnp.allclose(loss_f32, ref, rtol=1e-4, atol=1e-4), (loss_f32, ref)

    # 3) No hard negatives, bf16 path.
    loss2 = jax.block_until_ready(infonce_loss(z1, z2, None, temperature=0.05))
    ref2 = _reference_infonce(z1, z2, None, temperature=0.05)
    assert jnp.allclose(loss2, ref2, rtol=3e-2, atol=3e-2), (loss2, ref2)

    # 4) bf16 exp knob (EUP fast path on v6e/v7x) -- loose tolerance.
    loss_bx = jax.block_until_ready(
        infonce_loss(z1, z2, z3, temperature=0.05, hard_negative_weight=0.1,
                     exp_dtype=jnp.bfloat16))
    assert jnp.allclose(loss_bx, ref, rtol=5e-2, atol=5e-2), (loss_bx, ref)

    # 5) Multi-tile grid with awkward sizes: B=200 pads to 256 query columns
    #    (2 row tiles of 128) and K=400 pads to 512 key rows (4 key tiles),
    #    exercising the online LSE, padded-key masking and the hard-negative
    #    diagonal bump crossing tile boundaries.
    B2 = 200
    w1 = jax.random.normal(k4, (B2, E), dtype=jnp.float32)
    w2 = jax.random.normal(k5, (B2, E), dtype=jnp.float32)
    w3 = jax.random.normal(k6, (B2, E), dtype=jnp.float32)
    loss3 = jax.block_until_ready(
        infonce_loss(w1, w2, w3, temperature=0.05, hard_negative_weight=0.2,
                     block_rows=128, block_cols=128, matmul_dtype=jnp.float32))
    ref3 = _reference_infonce(w1, w2, w3, temperature=0.05, hard_negative_weight=0.2)
    assert jnp.allclose(loss3, ref3, rtol=1e-4, atol=1e-4), (loss3, ref3)

    print("KERNEL_OK")
</pallas_src>

<mosaic_0001>
module attributes {stable_mosaic.version = 11 : i64} {
  func.func @_infonce_lse_kernel(%arg0: i32, %arg1: i32, %arg2: memref<128x8xbf16, #tpu.memory_space<vmem>>, %arg3: memref<16x128xbf16, #tpu.memory_space<vmem>>, %arg4: memref<1x8xf32, #tpu.memory_space<vmem>>, %arg5: memref<1x8xf32, #tpu.memory_space<vmem>>, %arg6: memref<1x8xf32, #tpu.memory_space<vmem>>) attributes {dimension_semantics = [#tpu.dimension_semantics<parallel>, #tpu.dimension_semantics<arbitrary>], iteration_bounds = array<i64: 1, 1>, scalar_prefetch = 0 : i64, scratch_operands = 2 : i64, tpu.core_type = #tpu.core_type<tc>, window_params = [{transform_indices = @transform_0, window_bounds = array<i64: 128, 8>}, {transform_indices = @transform_1, window_bounds = array<i64: 16, 128>}, {transform_indices = @transform_2, window_bounds = array<i64: 1, 8>}]} {
    %c0_i32 = arith.constant 0 : i32
    %0 = arith.cmpi eq, %arg1, %c0_i32 : i32
    %1 = arith.extui %0 : i1 to i32
    %c0_i32_0 = arith.constant 0 : i32
    %2 = arith.cmpi ne, %1, %c0_i32_0 : i32
    scf.if %2 {
      %cst_19 = arith.constant -1.000000e+30 : f32
      %42 = vector.broadcast %cst_19 : f32 to vector<1x8xf32>
      %c0_20 = arith.constant 0 : index
      %c0_21 = arith.constant 0 : index
      %43 = vector.load %arg5[%c0_20, %c0_21] : memref<1x8xf32, #tpu.memory_space<vmem>>, vector<1x8xf32>
      tpu.vector_store %arg5[%c0_20, %c0_21], %42 {strides = array<i32>} : memref<1x8xf32, #tpu.memory_space<vmem>>, vector<1x8xf32>,
      %cst_22 = arith.constant 0.000000e+00 : f32
      %44 = vector.broadcast %cst_22 : f32 to vector<1x8xf32>
      %c0_23 = arith.constant 0 : index
      %c0_24 = arith.constant 0 : index
      %45 = vector.load %arg6[%c0_23, %c0_24] : memref<1x8xf32, #tpu.memory_space<vmem>>, vector<1x8xf32>
      tpu.vector_store %arg6[%c0_23, %c0_24], %44 {strides = array<i32>} : memref<1x8xf32, #tpu.memory_space<vmem>>, vector<1x8xf32>,
    } else {
    }
    %c0 = arith.constant 0 : index
    %c0_1 = arith.constant 0 : index
    %3 = vector.load %arg3[%c0, %c0_1] : memref<16x128xbf16, #tpu.memory_space<vmem>>, vector<16x128xbf16>
    %c0_2 = arith.constant 0 : index
    %c0_3 = arith.constant 0 : index
    %4 = vector.load %arg2[%c0_2, %c0_3] : memref<128x8xbf16, #tpu.memory_space<vmem>>, vector<128x8xbf16>
    %cst = arith.constant dense<0.000000e+00> : vector<16x8xf32>
    %5 = tpu.matmul %3, %4, %cst {dimension_numbers = #tpu.dot_dimension_numbers<[1], [0], [0], [1], [0, 0, 1, 1], [], []>} : vector<16x128xbf16>, vector<128x8xbf16>, vector<16x8xf32> -> vector<16x8xf32>
    %c16_i32 = arith.constant 16 : i32
    %6 = arith.muli %arg1, %c16_i32 : i32
    %7 = tpu.iota {dimensions = array<i32: 0>} : vector<16x1xi32>
    %8 = vector.broadcast %6 : i32 to vector<16x1xi32>
    %9 = arith.addi %8, %7 : vector<16x1xi32>
    %c8_i32 = arith.constant 8 : i32
    %10 = arith.muli %arg0, %c8_i32 : i32
    %11 = tpu.iota {dimensions = array<i32: 1>} : vector<1x8xi32>
    %12 = vector.broadcast %10 : i32 to vector<1x8xi32>
    %13 = arith.addi %12, %11 : vector<1x8xi32>
    %c8_i32_4 = arith.constant 8 : i32
    %14 = vector.broadcast %c8_i32_4 : i32 to vector<1x8xi32>
    %15 = arith.addi %13, %14 : vector<1x8xi32>
    %16 = vector.broadcast %9 : vector<16x1xi32> to vector<16x8xi32>
    %17 = vector.broadcast %15 : vector<1x8xi32> to vector<16x8xi32>
    %18 = arith.cmpi eq, %16, %17 : vector<16x8xi32>
    %cst_5 = arith.constant 1.000000e-01 : f32
    %cst_6 = arith.constant 0.000000e+00 : f32
    %19 = vector.broadcast %cst_5 : f32 to vector<16x8xf32>
    %20 = vector.broadcast %cst_6 : f32 to vector<16x8xf32>
    %21 = arith.select %18, %19, %20 : vector<16x8xi1>, vector<16x8xf32>
    %22 = arith.addf %5, %21 : vector<16x8xf32>
    %c0_7 = arith.constant 0 : index
    %c0_8 = arith.constant 0 : index
    %23 = vector.load %arg5[%c0_7, %c0_8] : memref<1x8xf32, #tpu.memory_space<vmem>>, vector<1x8xf32>
    %cst_9 = arith.constant dense<0xFF800000> : vector<8xf32>
    %24 = vector.multi_reduction <maximumf>, %22, %cst_9 [0] : vector<16x8xf32> to vector<8xf32>
    %25 = vector.shape_cast %24 : vector<8xf32> to vector<1x8xf32>
    %26 = arith.maximumf %23, %25 : vector<1x8xf32>
    %27 = vector.broadcast %26 : vector<1x8xf32> to vector<16x8xf32>
    %28 = arith.subf %22, %27 : vector<16x8xf32>
    %29 = math.exp %28 : vector<16x8xf32>
    %30 = arith.subf %23, %26 : vector<1x8xf32>
    %31 = math.exp %30 : vector<1x8xf32>
    %c0_10 = arith.constant 0 : index
    %c0_11 = arith.constant 0 : index
    %32 = vector.load %arg6[%c0_10, %c0_11] : memref<1x8xf32, #tpu.memory_space<vmem>>, vector<1x8xf32>
    %33 = arith.mulf %31, %32 : vector<1x8xf32>
    %cst_12 = arith.constant dense<0.000000e+00> : vector<8xf32>
    %34 = vector.multi_reduction <add>, %29, %cst_12 [0] : vector<16x8xf32> to vector<8xf32>
    %35 = vector.shape_cast %34 : vector<8xf32> to vector<1x8xf32>
    %36 = arith.addf %33, %35 : vector<1x8xf32>
    %c0_13 = arith.constant 0 : index
    %c0_14 = arith.constant 0 : index
    %37 = vector.load %arg6[%c0_13, %c0_14] : memref<1x8xf32, #tpu.memory_space<vmem>>, vector<1x8xf32>
    tpu.vector_store %arg6[%c0_13, %c0_14], %36 {strides = array<i32>} : memref<1x8xf32, #tpu.memory_space<vmem>>, vector<1x8xf32>,
    %c0_15 = arith.constant 0 : index
    %c0_16 = arith.constant 0 : index
    %38 = vector.load %arg5[%c0_15, %c0_16] : memref<1x8xf32, #tpu.memory_space<vmem>>, vector<1x8xf32>
    tpu.vector_store %arg5[%c0_15, %c0_16], %26 {strides = array<i32>} : memref<1x8xf32, #tpu.memory_space<vmem>>, vector<1x8xf32>,
    %c0_i32_17 = arith.constant 0 : i32
    %39 = arith.cmpi eq, %arg1, %c0_i32_17 : i32
    %40 = arith.extui %39 : i1 to i32
    %c0_i32_18 = arith.constant 0 : i32
    %41 = arith.cmpi ne, %40, %c0_i32_18 : i32
    scf.if %41 {
      %c0_19 = arith.constant 0 : index
      %c0_20 = arith.constant 0 : index
      %42 = vector.load %arg5[%c0_19, %c0_20] : memref<1x8xf32, #tpu.memory_space<vmem>>, vector<1x8xf32>
      %c0_21 = arith.constant 0 : index
      %c0_22 = arith.constant 0 : index
      %43 = vector.load %arg6[%c0_21, %c0_22] : memref<1x8xf32, #tpu.memory_space<vmem>>, vector<1x8xf32>
      %44 = math.log %43 : vector<1x8xf32>
      %45 = arith.addf %42, %44 : vector<1x8xf32>
      %c0_23 = arith.constant 0 : index
      %c0_24 = arith.constant 0 : index
      %46 = vector.load %arg4[%c0_23, %c0_24] : memref<1x8xf32, #tpu.memory_space<vmem>>, vector<1x8xf32>
      tpu.vector_store %arg4[%c0_23, %c0_24], %45 {strides = array<i32>} : memref<1x8xf32, #tpu.memory_space<vmem>>, vector<1x8xf32>,
    } else {
    }
    return
  }
  func.func @transform_0(%arg0: i32, %arg1: i32) -> (i32, i32) {
    %c0_i32 = arith.constant 0 : i32
    %c0_i32_0 = arith.constant 0 : i32
    return %c0_i32, %arg0 : i32, i32
  }
  func.func @transform_1(%arg0: i32, %arg1: i32) -> (i32, i32) {
    %c0_i32 = arith.constant 0 : i32
    %c0_i32_0 = arith.constant 0 : i32
    return %arg1, %c0_i32 : i32, i32
  }
  func.func @transform_2(%arg0: i32, %arg1: i32) -> (i32, i32) {
    %c0_i32 = arith.constant 0 : i32
    %c0_i32_0 = arith.constant 0 : i32
    return %c0_i32, %arg0 : i32, i32
  }
}

</mosaic_0001>

<llo_original>
// kernel: tpu_custom_call.1
$region0: #{tpu_custom_call.1}
  #allocation0 [shape = 'u32[]', space=smem, size = 0x4, offset = 0x4, fixed_abs, tag = 'smem constant byte address 0x4 - core index']
  #allocation1 [shape = 'u32[144,128]{1,0:T(1,128)}', space=vmem, size = 0x12000, scoped, tag = 'internal scratch']
  #allocation2 [shape = 'f32[1,8]{1,0:T(1,128)}', space=vmem, size = 0x200, scoped, tag = 'scratch operand']
  #allocation3 [shape = 'f32[1,8]{1,0:T(1,128)}', space=vmem, size = 0x200, scoped, tag = 'scratch operand']
  %s0 = inlined_call_operand.vmem [shape: bf16[128,8], index: 0, kind: input, shape index: {}]
  %s1 = inlined_call_operand.vmem [shape: bf16[16,128], index: 1, kind: input, shape index: {}]
  %s2 = inlined_call_operand.hbm [shape: f32[1,8], index: 2, kind: output, shape index: {}]
  %s3 = sld [smem:[#allocation0]]
  $region26: #{tpu_custom_call.1} parent=0
    _
  %s5 = ssub.s32 1, %s3
  %s6 = scalar_select 0, %s5, %s3
  $region1: #{tpu_custom_call.1} parent=0
    #allocation4 [shape = 'u8[512]{0}', space=vmem, size = 0x400, scoped, tag = 'output window, operand 0, single buffered']
    #allocation5 [shape = 's32[1]{0}', space=sflag, size = 0x4, scoped, tag = 'scoped memory for tpu_custom_call.1']
    %7 = vsyncpa [#allocation5], 0
    // Predicated region
    $region2: #{tpu_custom_call.1} parent=1 // pred_check
      _
    $region3: #{tpu_custom_call.1} parent=1 // pred_check_branch
      %9 = sbr.rel (0) target = $region5
    $region4: #{tpu_custom_call.1} parent=1 // pred_region
      _
    $region5: #{tpu_custom_call.1} parent=1 // pred_fallthru
      _
    // Predicated region
    $region6: #{tpu_custom_call.1} parent=1 // pred_check
      _
    $region7: #{tpu_custom_call.1} parent=1 // pred_check_branch
      %11 = sbr.rel (0) target = $region9
    $region8: #{tpu_custom_call.1} parent=1 // pred_region
      _
    $region9: #{tpu_custom_call.1} parent=1 // pred_fallthru
      _
    %p13 = scmp.eq.s32.totalorder 0, 0
    // Predicated region
    $region10: #{tpu_custom_call.1} parent=1 // pred_check
      %p14 = pneg %p13
    $region11: #{tpu_custom_call.1} parent=1 // pred_check_branch
      %16 = sbr.rel (%p14) target = $region13
    $region12: #{tpu_custom_call.1} parent=1 // pred_region
      %vm17 = vcmask 57344
      %18 = vst.msk [vmem:[#allocation2] sm:$0x1] %vm17, -1e+30
      %19 = vst.msk [vmem:[#allocation3] sm:$0x1] %vm17, 0.0
    $region13: #{tpu_custom_call.1} parent=1 // pred_fallthru
      _
    %v20 = vld [vmem:[%s1] sm:$0xf]
    %v21 = vld [vmem:[%s1 + $0x4] sm:$0xf]
    %v22 = vld [vmem:[%s0] sm:$0xf]
    %v23 = vld [vmem:[%s0 + $0x4] sm:$0xf]
    %v24 = vld [vmem:[%s0 + $0x8] sm:$0xf]
    %v25 = vld [vmem:[%s0 + $0xc] sm:$0xf]
    %v26 = vld [vmem:[%s0 + $0x10] sm:$0xf]
    %v27 = vld [vmem:[%s0 + $0x14] sm:$0xf]
    %v28 = vld [vmem:[%s0 + $0x18] sm:$0xf]
    %v29 = vld [vmem:[%s0 + $0x1c] sm:$0xf]
    %v30 = vld [vmem:[%s0 + $0x20] sm:$0xf]
    %v31 = vld [vmem:[%s0 + $0x24] sm:$0xf]
    %v32 = vld [vmem:[%s0 + $0x28] sm:$0xf]
    %v33 = vld [vmem:[%s0 + $0x2c] sm:$0xf]
    %v34 = vld [vmem:[%s0 + $0x30] sm:$0xf]
    %v35 = vld [vmem:[%s0 + $0x34] sm:$0xf]
    %v36 = vld [vmem:[%s0 + $0x38] sm:$0xf]
    %v37 = vld [vmem:[%s0 + $0x3c] sm:$0xf]
    %s38 = smul.u32 0, 16
    %v39 = vlaneseq
    %v40 = vshrl.u32 %v39, 7
    %v41 = vadd.s32 %v40, 8
    %v42 = vstv %s38
    %v43 = vadd.s32 %v42, %v40
    %v44 = vadd.s32 %v42, %v41
    %s45 = smul.u32 0, 8
    %v46 = vlaneseq
    %v47 = vand.u32 %v46, 127
    %v48 = vstv %s45
    %v49 = vadd.s32 %v48, %v47
    %v50 = vadd.s32 %v49, 8
    %vm51 = vcmp.eq.s32.totalorder %v43, %v50
    %vm52 = vcmp.eq.s32.totalorder %v44, %v50
    %v53 = vsel %vm51, 0.1, 0.0
    %v54 = vsel %vm52, 0.1, 0.0
    %v57 = vunpack.c.l.b16 %v20
    %v58 = vunpack.c.l.b16 %v21
    %v59 = vpack.c.b16 %v58, %v57
    %v77 = vunpack.c.l.b16 %v22
    %v78 = vunpack.c.l.b16 %v23
    %v79 = vunpack.c.l.b16 %v24
    %v80 = vunpack.c.l.b16 %v25
    %v81 = vunpack.c.l.b16 %v26
    %v82 = vunpack.c.l.b16 %v27
    %v83 = vunpack.c.l.b16 %v28
    %v84 = vunpack.c.l.b16 %v29
    %v85 = vunpack.c.l.b16 %v30
    %v86 = vunpack.c.l.b16 %v31
    %v87 = vunpack.c.l.b16 %v32
    %v88 = vunpack.c.l.b16 %v33
    %v89 = vunpack.c.l.b16 %v34
    %v90 = vunpack.c.l.b16 %v35
    %v91 = vunpack.c.l.b16 %v36
    %v92 = vunpack.c.l.b16 %v37
    %v93 = vpack.c.b16 %v78, %v77
    %v94 = vpack.c.b16 %v80, %v79
    %v95 = vpack.c.b16 %v82, %v81
    %v96 = vpack.c.b16 %v84, %v83
    %v97 = vpack.c.b16 %v86, %v85
    %v98 = vpack.c.b16 %v88, %v87
    %v99 = vpack.c.b16 %v90, %v89
    %v100 = vpack.c.b16 %v92, %v91
    %109 = vmatprep.subr.bf16.mxu0 0
    %110 = vmatpush1.bf16.msra.mxu0 %v93
    %111 = vmatprep.subr.bf16.mxu0 0
    %112 = vmatpush1.bf16.msra.mxu0 %v94
    %113 = vmatprep.subr.bf16.mxu0 0
    %114 = vmatpush1.bf16.msra.mxu0 %v95
    %115 = vmatprep.subr.bf16.mxu0 0
    %116 = vmatpush1.bf16.msra.mxu0 %v96
    %117 = vmatprep.subr.bf16.mxu0 0
    %118 = vmatpush1.bf16.msra.mxu0 %v97
    %119 = vmatprep.subr.bf16.mxu0 0
    %120 = vmatpush1.bf16.msra.mxu0 %v98
    %121 = vmatprep.subr.bf16.mxu0 0
    %122 = vmatpush1.bf16.msra.mxu0 %v99
    %123 = vmatprep.subr.bf16.mxu0 0
    %124 = vmatpush1.bf16.msra.mxu0 %v100
    %125 = vmatprep.subr.bf16.mxu0 0
    %126 = vmatpush1.bf16.msra.mxu0 0
    %127 = vmatprep.subr.bf16.mxu0 0
    %128 = vmatpush1.bf16.msra.mxu0 0
    %129 = vmatprep.subr.bf16.mxu0 0
    %130 = vmatpush1.bf16.msra.mxu0 0
    %131 = vmatprep.subr.bf16.mxu0 0
    %132 = vmatpush1.bf16.msra.mxu0 0
    %133 = vmatprep.subr.bf16.mxu0 0
    %134 = vmatpush1.bf16.msra.mxu0 0
    %135 = vmatprep.subr.bf16.mxu0 0
    %136 = vmatpush1.bf16.msra.mxu0 0
    %137 = vmatprep.subr.bf16.mxu0 0
    %138 = vmatpush1.bf16.msra.mxu0 0
    %139 = vmatprep.subr.bf16.mxu0 0
    %140 = vmatpush1.bf16.msra.mxu0 0
    %141 = vmatprep.mubr.bf16.mxu0 0
    %142 = vmatmul.mubr.bf16.gmra.mrb[0].mxu0 %v59
    %v143 = vpop.f32.mrb[0].mxu0
    %v144 = vadd.f32 %v53, %v143
    %v145 = vpop.f32.mrb[0].mxu0
    %v146 = vpop.f32.mrb[0].mxu0
    %v147 = vadd.f32 %v54, %v146
    %v148 = vpop.f32.mrb[0].mxu0
    %149 = vdwg.mxu0
    %v150 = vld [vmem:[#allocation2] sm:$0x1]
    %vm151 = vcmask 64512
    %v152 = vsel %vm151, %v144, -inf
    %v153 = vsel %vm151, %v147, -inf
    %v154 = vmax.f32 %v152, %v153
    %v155 = vrot.slane %v154, 4
    %v156 = vmax.f32 %v154, %v155
    %v157 = vrot.slane %v156, 2
    %v158 = vmax.f32 %v156, %v157
    %v159 = vrot.slane %v158, 1
    %v160 = vmax.f32 %v158, %v159
    %v161 = vmax.f32 %v150, %v160
    %v163 = vlaneseq
    %v164 = vshrl.u32 %v163, 7
    %v165 = vsub.s32 0, %v164
    %v166 = vrot.slane %v161, %v165
    %v168 = vsub.f32 %v144, %v166
    %v169 = vsub.f32 %v147, %v166
    %v170 = vmul.f32 %v168, 1.442695
    %v171 = vpow.pop %v170
    %v172 = vmul.f32 %v169, 1.442695
    %v173 = vpow.pop %v172
    %v174 = vsub.f32 %v150, %v161
    %v175 = vmul.f32 %v174, 1.442695
    %v176 = vpow.pop %v175
    %v177 = vld [vmem:[#allocation3] sm:$0x1]
    %v178 = vmul.f32 %v176, %v177
    %v179 = vsel %vm151, %v171, 0.0
    %v180 = vsel %vm151, %v173, 0.0
    %v181 = vadd.f32 %v179, %v180
    %v182 = vrot.slane %v181, 4
    %v183 = vadd.f32 %v181, %v182
    %v184 = vrot.slane %v183, 2
    %v185 = vadd.f32 %v183, %v184
    %v186 = vrot.slane %v185, 1
    %v187 = vadd.f32 %v185, %v186
    %v188 = vadd.f32 %v178, %v187
    %vm189 = vcmask 57344
    %190 = vst.msk [vmem:[#allocation3] sm:$0x1] %vm189, %v188
    %191 = vst.msk [vmem:[#allocation2] sm:$0x1] %vm189, %v161
    // Predicated region
    $region14: #{tpu_custom_call.1} parent=1 // pred_check
      %p192 = pneg %p13
    $region15: #{tpu_custom_call.1} parent=1 // pred_check_branch
      %194 = sbr.rel (%p192) target = $region17
    $region16: #{tpu_custom_call.1} parent=1 // pred_region
      %v195 = vld [vmem:[#allocation2] sm:$0x1]
      %v196 = vld [vmem:[#allocation3] sm:$0x1]
      %v197 = vlog2.pop %v196
      %v198 = vmul.f32 %v197, 0.6931472
      %v199 = vadd.f32 %v195, %v198
      %200 = vst.msk [vmem:[#allocation4] sm:$0x1] %vm189, %v199
    $region17: #{tpu_custom_call.1} parent=1 // pred_fallthru
      _
    // Predicated region
    $region18: #{tpu_custom_call.1} parent=1 // pred_check
      _
    $region19: #{tpu_custom_call.1} parent=1 // pred_check_branch
      %202 = sbr.rel (0) target = $region21
    $region20: #{tpu_custom_call.1} parent=1 // pred_region
      %s204 = ssub.s32 16, 16
      %205 = vsyncadd [#allocation5], %s204
      %s207 = sshll.u32 [#allocation4], 4
      %s208 = int_to_ptr.vmem [resolvable:$true] %s207
      %210 = dma.vmem_to_hbm [thread:$0]  %s208, 16, %s2, [#allocation5]
    $region21: #{tpu_custom_call.1} parent=1 // pred_fallthru
      _
    // Predicated region
    $region22: #{tpu_custom_call.1} parent=1 // pred_check
      _
    $region23: #{tpu_custom_call.1} parent=1 // pred_check_branch
      %212 = sbr.rel (0) target = $region25
    $region24: #{tpu_custom_call.1} parent=1 // pred_region
      %213 = dma.done [#allocation5], 16
    $region25: #{tpu_custom_call.1} parent=1 // pred_fallthru
      _
    %214 = vsyncpa [#allocation5], 1

</llo_original>
